<compile_context>
chip_gen: v7x
topology: tpu7x:2x2x1
jax: 0.10.0
libtpu: 0.0.40
codegen_flags: <defaults>
</compile_context>

<pallas_src>
import functools

import jax
import jax.numpy as jnp
from jax import lax
from jax.experimental import pallas as pl
from jax.experimental.pallas import tpu as pltpu


_MAX_LANE_TILE = 65536   # lanes; kept a power-of-two multiple of 128
_MAX_ROW_TILE = 1024     # sublane rows per block


def _chip_config():
    """Returns (input_buffer_budget_bytes, vmem_limit_bytes, two_tensorcores)."""
    try:
        kind = jax.devices()[0].device_kind.lower().replace(" ", "")
    except Exception:
        kind = ""
    if "v7" in kind or "tpu7" in kind:
        # v7x: ~3.2 TB/s HBM per TC -> target ~8 MiB of input per step, but
        # only 64 MiB physical VMEM, so keep double-buffered inputs well below.
        return 30 * 2**20, 40 * 2**20, True
    if "v6" in kind:
        # v6e: 1 TC, 128 MiB VMEM, ~1.4 TB/s HBM.
        return 24 * 2**20, 40 * 2**20, False
    if "v5e" in kind or "v5lite" in kind or "v5l" in kind:
        # v5e: ~0.8 TB/s HBM; ~2-3 MiB per step already reaches ~roofline.
        return 12 * 2**20, 20 * 2**20, False
    # Unknown chip / interpreter: conservative settings.
    return 12 * 2**20, 20 * 2**20, False


def _fold_lanes_to_128(v):
    """Reduce (R, L) -> (R, 128) with pure VPU adds; L must be 128 * 2**m."""
    width = v.shape[-1]
    while width > 128:
        half = width // 2
        v = v[:, :half] + v[:, half:]
        width = half
    return v


def _dice_partial_kernel(x_ref, y_ref, num_out_ref, den_out_ref,
                         num_acc, den_acc, *,
                         tiles_per_shard, num_lane_tiles, rem, has_oob):
    """Accumulate per-row sum(x*y) and sum(x^2 + y^2) over the lane axis.

    x_ref, y_ref : (r_tile, lane_tile) VMEM tiles (native dtype, cast in VMEM)
    num_out_ref  : (1, r_tile, 1) per-(shard, row-block) partial numerator
    den_out_ref  : (1, r_tile, 1) per-(shard, row-block) partial denominator
    num_acc/den_acc : (r_tile, 128) f32 lane-dense VMEM accumulators
    """
    p = pl.program_id(0)   # shard axis (only >1 on 2-TC chips)
    k = pl.program_id(2)   # lane-tile reduction axis

    @pl.when(k == 0)
    def _init():
        num_acc[...] = jnp.zeros_like(num_acc)
        den_acc[...] = jnp.zeros_like(den_acc)

    xf = x_ref[...].astype(jnp.float32)
    yf = y_ref[...].astype(jnp.float32)

    def accumulate(xv, yv):
        num_acc[...] += _fold_lanes_to_128(xv * yv)
        den_acc[...] += _fold_lanes_to_128(xv * xv + yv * yv)

    global_idx = p * tiles_per_shard + k
    ragged = rem is not None

    if ragged:
        # Interior tiles: no mask -> steady state stays at the HBM roofline.
        if num_lane_tiles > 1:
            @pl.when(global_idx < num_lane_tiles - 1)
            def _interior():
                accumulate(xf, yf)

        # Boundary tile only: mask the statically-known ragged lane tail.
        # (Fully out-of-bounds clamped tiles, if sharded, match neither branch
        #  and are skipped entirely.)
        @pl.when(global_idx == num_lane_tiles - 1)
        def _boundary():
            lane = lax.broadcasted_iota(jnp.int32, xf.shape, dimension=1)
            mask = lane < rem          # rem is a static Python int (<= 65536)
            accumulate(jnp.where(mask, xf, 0.0), jnp.where(mask, yf, 0.0))
    elif has_oob:
        @pl.when(global_idx < num_lane_tiles)
        def _inbounds():
            accumulate(xf, yf)
    else:
        accumulate(xf, yf)

    @pl.when(k == pl.num_programs(2) - 1)
    def _finalize():
        # Single cross-lane (XLU) reduce + narrow store, once per row block.
        num_out_ref[0] = jnp.sum(num_acc[...], axis=-1, keepdims=True)
        den_out_ref[0] = jnp.sum(den_acc[...], axis=-1, keepdims=True)


def _pick_row_tile(R):
    if R <= _MAX_ROW_TILE:
        return R
    for rt in (1024, 512, 256, 128, 64, 32, 16, 8):
        if R % rt == 0:
            return rt
    # Ragged last row block: out-of-bounds rows read garbage but never pollute
    # valid rows (row reductions are independent) and their output writes are
    # dropped by Pallas.
    return 512


def _partial_sums(x2, y2):
    """Per-row sum(x*y) and sum(x*x + y*y) of two (R, S) arrays, one HBM pass."""
    R, S = x2.shape
    input_budget, vmem_limit, two_cores = _chip_config()

    r_tile = _pick_row_tile(R)
    num_row_blocks = pl.cdiv(R, r_tile)

    # Lane tile: power-of-two multiple of 128, as large as the double-buffered
    # input VMEM budget allows. Budget math uses itemsize, so narrow dtypes
    # (bf16/fp8) automatically get proportionally wider tiles.
    per_lane_bytes = r_tile * (x2.dtype.itemsize + y2.dtype.itemsize)
    s_pad128 = pl.cdiv(S, 128) * 128
    lane_tile = 128
    while (lane_tile < s_pad128
           and lane_tile * 2 <= _MAX_LANE_TILE
           and 2 * (lane_tile * 2) * per_lane_bytes <= input_budget):
        lane_tile *= 2

    num_lane_tiles = pl.cdiv(S, lane_tile)
    ragged = num_lane_tiles * lane_tile != S
    rem = (S - (num_lane_tiles - 1) * lane_tile) if ragged else None

    # Shard the lane stream across TensorCores only on 2-TC chips (v7x) and
    # only when the (parallel) row axis offers no parallelism of its own.
    num_shards = 2 if (two_cores and num_row_blocks == 1
                       and num_lane_tiles >= 8) else 1
    tiles_per_shard = pl.cdiv(num_lane_tiles, num_shards)
    has_oob = num_shards * tiles_per_shard > num_lane_tiles

    if has_oob:
        def in_index_map(p, rb, k):
            # Clamp fully out-of-range trailing shard tiles onto the last
            # valid tile; the kernel skips their contribution entirely.
            return (rb, jnp.minimum(p * tiles_per_shard + k, num_lane_tiles - 1))
    else:
        def in_index_map(p, rb, k):
            return (rb, p * tiles_per_shard + k)

    kernel = functools.partial(
        _dice_partial_kernel,
        tiles_per_shard=tiles_per_shard,
        num_lane_tiles=num_lane_tiles,
        rem=rem,
        has_oob=has_oob,
    )

    num_p, den_p = pl.pallas_call(
        kernel,
        out_shape=(
            jax.ShapeDtypeStruct((num_shards, R, 1), jnp.float32),
            jax.ShapeDtypeStruct((num_shards, R, 1), jnp.float32),
        ),
        grid_spec=pltpu.PrefetchScalarGridSpec(
            num_scalar_prefetch=0,
            grid=(num_shards, num_row_blocks, tiles_per_shard),
            in_specs=[
                pl.BlockSpec((r_tile, lane_tile), in_index_map),
                pl.BlockSpec((r_tile, lane_tile), in_index_map),
            ],
            out_specs=(
                pl.BlockSpec((1, r_tile, 1), lambda p, rb, k: (p, rb, 0)),
                pl.BlockSpec((1, r_tile, 1), lambda p, rb, k: (p, rb, 0)),
            ),
            scratch_shapes=[
                pltpu.VMEM((r_tile, 128), jnp.float32),
                pltpu.VMEM((r_tile, 128), jnp.float32),
            ],
        ),
        compiler_params=pltpu.CompilerParams(
            dimension_semantics=("parallel", "parallel", "arbitrary"),
            vmem_limit_bytes=int(vmem_limit),
        ),
    )(x2, y2)

    num = jnp.sum(num_p[:, :, 0], axis=0)   # (R,)
    den = jnp.sum(den_p[:, :, 0], axis=0)   # (R,)
    return num, den


@functools.partial(jax.jit, static_argnames=("channelwise",))
def sorensen_dice_loss(inp, target, *, channelwise=True):
    """Matches PyTorch SorensenDiceLoss.forward (no eps: 0/0 -> NaN, like ref)."""
    if channelwise:
        N, C = inp.shape[0], inp.shape[1]
        # Free, contiguous reshape (no transpose pass): row r = (n, c).
        x2 = inp.reshape(N * C, -1)
        y2 = target.reshape(N * C, -1)
        num, den = _partial_sums(x2, y2)
        # Tiny O(N*C) epilogue in JAX: fold sample rows into channels.
        num_c = num.reshape(N, C).sum(axis=0)
        den_c = den.reshape(N, C).sum(axis=0)
        return jnp.sum(-2.0 * (num_c / den_c))
    else:
        total = inp.size
        rows = 1
        for r in (8, 4, 2):
            if total % r == 0:
                rows = r
                break
        x2 = inp.reshape(rows, total // rows)
        y2 = target.reshape(rows, total // rows)
        num, den = _partial_sums(x2, y2)
        return -2.0 * (jnp.sum(num) / jnp.sum(den))


def _reference(inp, target, channelwise=True):
    """Pure-JAX mirror of the PyTorch forward, for verification."""
    if not channelwise:
        num = jnp.sum(inp * target)
        den = jnp.sum(inp * inp) + jnp.sum(target * target)
        return -2.0 * (num / den)
    C = inp.shape[1]
    perm = list(range(inp.ndim))
    perm[0], perm[1] = perm[1], perm[0]
    x = jnp.transpose(inp, perm).reshape(C, -1)
    y = jnp.transpose(target, perm).reshape(C, -1)
    num = jnp.sum(x * y, axis=-1)
    den = jnp.sum(x * x, axis=-1) + jnp.sum(y * y, axis=-1)
    return jnp.sum(-2.0 * (num / den))


if __name__ == "__main__":
    key = jax.random.PRNGKey(0)
    k1, k2 = jax.random.split(key)

    N, C, H, W = 2, 4, 16, 16
    inp = jax.nn.sigmoid(jax.random.normal(k1, (N, C, H, W), dtype=jnp.float32))
    tgt = (jax.random.uniform(k2, (N, C, H, W)) > 0.5).astype(jnp.float32)

    loss_cw = sorensen_dice_loss(inp, tgt, channelwise=True)
    loss_joint = sorensen_dice_loss(inp, tgt, channelwise=False)
    jax.block_until_ready((loss_cw, loss_joint))

    ref_cw = _reference(inp, tgt, channelwise=True)
    ref_joint = _reference(inp, tgt, channelwise=False)
    assert jnp.allclose(loss_cw, ref_cw, rtol=1e-5, atol=1e-5), (loss_cw, ref_cw)
    assert jnp.allclose(loss_joint, ref_joint, rtol=1e-5, atol=1e-5), (
        loss_joint, ref_joint)

    print("KERNEL_OK")
</pallas_src>

<mosaic_0001>
module attributes {stable_mosaic.version = 11 : i64} {
  func.func @_dice_partial_kernel(%arg0: i32, %arg1: i32, %arg2: i32, %arg3: memref<8x256xf32, #tpu.memory_space<vmem>>, %arg4: memref<8x256xf32, #tpu.memory_space<vmem>>, %arg5: memref<1x8x1xf32, #tpu.memory_space<vmem>>, %arg6: memref<1x8x1xf32, #tpu.memory_space<vmem>>, %arg7: memref<8x128xf32, #tpu.memory_space<vmem>>, %arg8: memref<8x128xf32, #tpu.memory_space<vmem>>) attributes {dimension_semantics = [#tpu.dimension_semantics<parallel>, #tpu.dimension_semantics<parallel>, #tpu.dimension_semantics<arbitrary>], iteration_bounds = array<i64: 1, 1, 1>, scalar_prefetch = 0 : i64, scratch_operands = 2 : i64, tpu.core_type = #tpu.core_type<tc>, window_params = [{transform_indices = @transform_0, window_bounds = array<i64: 8, 256>}, {transform_indices = @transform_1, window_bounds = array<i64: 8, 256>}, {transform_indices = @transform_2, window_bounds = array<i64: 1, 8, 1>}, {transform_indices = @transform_3, window_bounds = array<i64: 1, 8, 1>}]} {
    %c0_i32 = arith.constant 0 : i32
    %0 = arith.cmpi eq, %arg2, %c0_i32 : i32
    %1 = arith.extui %0 : i1 to i32
    %c0_i32_0 = arith.constant 0 : i32
    %2 = arith.cmpi ne, %1, %c0_i32_0 : i32
    scf.if %2 {
      %cst = arith.constant 0.000000e+00 : f32
      %24 = vector.broadcast %cst : f32 to vector<8x128xf32>
      %c0_14 = arith.constant 0 : index
      %c0_15 = arith.constant 0 : index
      %25 = vector.load %arg7[%c0_14, %c0_15] : memref<8x128xf32, #tpu.memory_space<vmem>>, vector<8x128xf32>
      tpu.vector_store %arg7[%c0_14, %c0_15], %24 {strides = array<i32>} : memref<8x128xf32, #tpu.memory_space<vmem>>, vector<8x128xf32>,
      %cst_16 = arith.constant 0.000000e+00 : f32
      %26 = vector.broadcast %cst_16 : f32 to vector<8x128xf32>
      %c0_17 = arith.constant 0 : index
      %c0_18 = arith.constant 0 : index
      %27 = vector.load %arg8[%c0_17, %c0_18] : memref<8x128xf32, #tpu.memory_space<vmem>>, vector<8x128xf32>
      tpu.vector_store %arg8[%c0_17, %c0_18], %26 {strides = array<i32>} : memref<8x128xf32, #tpu.memory_space<vmem>>, vector<8x128xf32>,
    } else {
    }
    %c0 = arith.constant 0 : index
    %c0_1 = arith.constant 0 : index
    %3 = vector.load %arg3[%c0, %c0_1] : memref<8x256xf32, #tpu.memory_space<vmem>>, vector<8x256xf32>
    %c0_2 = arith.constant 0 : index
    %c0_3 = arith.constant 0 : index
    %4 = vector.load %arg4[%c0_2, %c0_3] : memref<8x256xf32, #tpu.memory_space<vmem>>, vector<8x256xf32>
    %c0_4 = arith.constant 0 : index
    %c0_5 = arith.constant 0 : index
    %5 = vector.load %arg7[%c0_4, %c0_5] : memref<8x128xf32, #tpu.memory_space<vmem>>, vector<8x128xf32>
    %6 = arith.mulf %3, %4 : vector<8x256xf32>
    %7 = vector.extract_strided_slice %6 {offsets = [0, 0], sizes = [8, 128], strides = [1, 1]} : vector<8x256xf32> to vector<8x128xf32>
    %8 = vector.extract_strided_slice %6 {offsets = [0, 128], sizes = [8, 128], strides = [1, 1]} : vector<8x256xf32> to vector<8x128xf32>
    %9 = arith.addf %7, %8 : vector<8x128xf32>
    %10 = arith.addf %5, %9 : vector<8x128xf32>
    %c0_6 = arith.constant 0 : index
    %c0_7 = arith.constant 0 : index
    %11 = vector.load %arg7[%c0_6, %c0_7] : memref<8x128xf32, #tpu.memory_space<vmem>>, vector<8x128xf32>
    tpu.vector_store %arg7[%c0_6, %c0_7], %10 {strides = array<i32>} : memref<8x128xf32, #tpu.memory_space<vmem>>, vector<8x128xf32>,
    %c0_8 = arith.constant 0 : index
    %c0_9 = arith.constant 0 : index
    %12 = vector.load %arg8[%c0_8, %c0_9] : memref<8x128xf32, #tpu.memory_space<vmem>>, vector<8x128xf32>
    %13 = arith.mulf %3, %3 : vector<8x256xf32>
    %14 = arith.mulf %4, %4 : vector<8x256xf32>
    %15 = arith.addf %13, %14 : vector<8x256xf32>
    %16 = vector.extract_strided_slice %15 {offsets = [0, 0], sizes = [8, 128], strides = [1, 1]} : vector<8x256xf32> to vector<8x128xf32>
    %17 = vector.extract_strided_slice %15 {offsets = [0, 128], sizes = [8, 128], strides = [1, 1]} : vector<8x256xf32> to vector<8x128xf32>
    %18 = arith.addf %16, %17 : vector<8x128xf32>
    %19 = arith.addf %12, %18 : vector<8x128xf32>
    %c0_10 = arith.constant 0 : index
    %c0_11 = arith.constant 0 : index
    %20 = vector.load %arg8[%c0_10, %c0_11] : memref<8x128xf32, #tpu.memory_space<vmem>>, vector<8x128xf32>
    tpu.vector_store %arg8[%c0_10, %c0_11], %19 {strides = array<i32>} : memref<8x128xf32, #tpu.memory_space<vmem>>, vector<8x128xf32>,
    %c0_i32_12 = arith.constant 0 : i32
    %21 = arith.cmpi eq, %arg2, %c0_i32_12 : i32
    %22 = arith.extui %21 : i1 to i32
    %c0_i32_13 = arith.constant 0 : i32
    %23 = arith.cmpi ne, %22, %c0_i32_13 : i32
    scf.if %23 {
      %c0_14 = arith.constant 0 : index
      %c0_15 = arith.constant 0 : index
      %24 = vector.load %arg7[%c0_14, %c0_15] : memref<8x128xf32, #tpu.memory_space<vmem>>, vector<8x128xf32>
      %cst = arith.constant dense<0.000000e+00> : vector<8xf32>
      %25 = vector.multi_reduction <add>, %24, %cst [1] : vector<8x128xf32> to vector<8xf32>
      %26 = vector.shape_cast %25 : vector<8xf32> to vector<8x1xf32>
      %c0_16 = arith.constant 0 : index
      %c0_17 = arith.constant 0 : index
      %c0_18 = arith.constant 0 : index
      %27 = vector.load %arg5[%c0_16, %c0_17, %c0_18] : memref<1x8x1xf32, #tpu.memory_space<vmem>>, vector<1x8x1xf32>
      %28 = vector.shape_cast %27 : vector<1x8x1xf32> to vector<8x1xf32>
      %29 = vector.shape_cast %26 : vector<8x1xf32> to vector<1x8x1xf32>
      tpu.vector_store %arg5[%c0_16, %c0_17, %c0_18], %29 {strides = array<i32>} : memref<1x8x1xf32, #tpu.memory_space<vmem>>, vector<1x8x1xf32>,
      %c0_19 = arith.constant 0 : index
      %c0_20 = arith.constant 0 : index
      %30 = vector.load %arg8[%c0_19, %c0_20] : memref<8x128xf32, #tpu.memory_space<vmem>>, vector<8x128xf32>
      %cst_21 = arith.constant dense<0.000000e+00> : vector<8xf32>
      %31 = vector.multi_reduction <add>, %30, %cst_21 [1] : vector<8x128xf32> to vector<8xf32>
      %32 = vector.shape_cast %31 : vector<8xf32> to vector<8x1xf32>
      %c0_22 = arith.constant 0 : index
      %c0_23 = arith.constant 0 : index
      %c0_24 = arith.constant 0 : index
      %33 = vector.load %arg6[%c0_22, %c0_23, %c0_24] : memref<1x8x1xf32, #tpu.memory_space<vmem>>, vector<1x8x1xf32>
      %34 = vector.shape_cast %33 : vector<1x8x1xf32> to vector<8x1xf32>
      %35 = vector.shape_cast %32 : vector<8x1xf32> to vector<1x8x1xf32>
      tpu.vector_store %arg6[%c0_22, %c0_23, %c0_24], %35 {strides = array<i32>} : memref<1x8x1xf32, #tpu.memory_space<vmem>>, vector<1x8x1xf32>,
    } else {
    }
    return
  }
  func.func @transform_0(%arg0: i32, %arg1: i32, %arg2: i32) -> (i32, i32) {
    %c1_i32 = arith.constant 1 : i32
    %0 = arith.muli %arg0, %c1_i32 : i32
    %1 = arith.addi %0, %arg2 : i32
    %c0_i32 = arith.constant 0 : i32
    return %arg1, %1 : i32, i32
  }
  func.func @transform_1(%arg0: i32, %arg1: i32, %arg2: i32) -> (i32, i32) {
    %c1_i32 = arith.constant 1 : i32
    %0 = arith.muli %arg0, %c1_i32 : i32
    %1 = arith.addi %0, %arg2 : i32
    %c0_i32 = arith.constant 0 : i32
    return %arg1, %1 : i32, i32
  }
  func.func @transform_2(%arg0: i32, %arg1: i32, %arg2: i32) -> (i32, i32, i32) {
    %c0_i32 = arith.constant 0 : i32
    %c0_i32_0 = arith.constant 0 : i32
    return %arg0, %arg1, %c0_i32 : i32, i32, i32
  }
  func.func @transform_3(%arg0: i32, %arg1: i32, %arg2: i32) -> (i32, i32, i32) {
    %c0_i32 = arith.constant 0 : i32
    %c0_i32_0 = arith.constant 0 : i32
    return %arg0, %arg1, %c0_i32 : i32, i32, i32
  }
}

</mosaic_0001>

<llo_original>
// kernel: sorensen_dice_loss.1
$region0: #{sorensen_dice_loss.1}
  #allocation0 [shape = 'u32[]', space=smem, size = 0x4, offset = 0x4, fixed_abs, tag = 'smem constant byte address 0x4 - core index']
  #allocation1 [shape = 'u32[144,128]{1,0:T(1,128)}', space=vmem, size = 0x12000, scoped, tag = 'internal scratch']
  #allocation2 [shape = 'f32[8,128]{1,0:T(8,128)}', space=vmem, size = 0x1000, scoped, tag = 'scratch operand']
  #allocation3 [shape = 'f32[8,128]{1,0:T(8,128)}', space=vmem, size = 0x1000, scoped, tag = 'scratch operand']
  %s0 = inlined_call_operand.vmem [shape: f32[8,256], index: 0, kind: input, shape index: {}]
  %s1 = inlined_call_operand.vmem [shape: f32[8,256], index: 1, kind: input, shape index: {}]
  %s2 = inlined_call_operand.vmem [shape: f32[1,8,1], index: 2, kind: output, shape index: {0}]
  %s3 = inlined_call_operand.vmem [shape: f32[1,8,1], index: 3, kind: output, shape index: {1}]
  %4 = xla_tuple %s2, %s3
  %s5 = sld [smem:[#allocation0]]
  $region34: #{sorensen_dice_loss.1} parent=0
    _
  %s7 = ssub.s32 1, %s5
  %s8 = scalar_select 0, %s7, %s5
  // Predicated region
  $region2: #{sorensen_dice_loss.1} parent=0 // pred_check
    _
  $region3: #{sorensen_dice_loss.1} parent=0 // pred_check_branch
    %10 = sbr.rel (0) target = $region5
  $region4: #{sorensen_dice_loss.1} parent=0 // pred_region
    %s11 = sadd.s32 0, 0
    %s12 = smul.u32 2, %s11
    %p13 = scmp.lt.s32.totalorder %s12, 1
    %s14 = scalar_select %p13, %s12, 1
    %s15 = smul.addr %s14, 8
    %s16 = scalar_lea.vmem %s0, %s15
    %s17 = sadd.s32 0, 0
    %s18 = smul.u32 2, %s17
  $region5: #{sorensen_dice_loss.1} parent=0 // pred_fallthru
    _
  // Predicated region
  $region6: #{sorensen_dice_loss.1} parent=0 // pred_check
    _
  $region7: #{sorensen_dice_loss.1} parent=0 // pred_check_branch
    %20 = sbr.rel (0) target = $region9
  $region8: #{sorensen_dice_loss.1} parent=0 // pred_region
    %s21 = sadd.s32 0, 0
    %s22 = smul.u32 2, %s21
    %p23 = scmp.lt.s32.totalorder %s22, 1
    %s24 = scalar_select %p23, %s22, 1
    %s25 = smul.addr %s24, 8
    %s26 = scalar_lea.vmem %s1, %s25
    %s27 = sadd.s32 0, 0
    %s28 = smul.u32 2, %s27
  $region9: #{sorensen_dice_loss.1} parent=0 // pred_fallthru
    _
  %s29 = sadd.s32 0, 0
  %s30 = smul.u32 2, %s29
  %p31 = scmp.lt.s32.totalorder %s30, 1
  %s32 = scalar_select %p31, %s30, 1
  %s33 = smul.addr %s32, 8
  %s34 = scalar_lea.vmem %s0, %s33
  %s35 = sadd.s32 0, 0
  %s36 = smul.u32 2, %s35
  %p37 = scmp.lt.s32.totalorder %s36, 1
  %s38 = scalar_select %p37, %s36, 1
  %s39 = smul.addr %s38, 8
  %s40 = scalar_lea.vmem %s1, %s39
  %s41 = sadd.s32 0, 0
  %s42 = smul.u32 2, %s41
  %p43 = scmp.lt.s32.totalorder %s42, 1
  %s44 = scalar_select %p43, %s42, 1
  %s45 = smul.addr %s44, 8
  %s46 = scalar_lea.vmem %s0, %s45
  %s47 = sadd.s32 0, 0
  %s48 = smul.u32 2, %s47
  %s49 = sadd.s32 0, 0
  %s50 = smul.u32 2, %s49
  %p51 = scmp.lt.s32.totalorder %s50, 1
  %s52 = scalar_select %p51, %s50, 1
  %s53 = smul.addr %s52, 8
  %s54 = scalar_lea.vmem %s1, %s53
  %s55 = sadd.s32 0, 0
  %s56 = smul.u32 2, %s55
  %p57 = scmp.eq.s32.totalorder 0, 0
  // Predicated region
  $region10: #{sorensen_dice_loss.1} parent=0 // pred_check
    %p58 = pneg %p57
  $region11: #{sorensen_dice_loss.1} parent=0 // pred_check_branch
    %60 = sbr.rel (%p58) target = $region13
  $region12: #{sorensen_dice_loss.1} parent=0 // pred_region
    %61 = vst [vmem:[#allocation2] sm:$0xff] 0.0
    %62 = vst [vmem:[#allocation3] sm:$0xff] 0.0
  $region13: #{sorensen_dice_loss.1} parent=0 // pred_fallthru
    _
  %v63 = vld [vmem:[%s46] sm:$0xff]
  %v64 = vld [vmem:[%s46 + $0x8] sm:$0xff]
  %v65 = vld [vmem:[%s54] sm:$0xff]
  %v66 = vld [vmem:[%s54 + $0x8] sm:$0xff]
  %v67 = vld [vmem:[#allocation2] sm:$0xff]
  %v68 = vmul.f32 %v63, %v65
  %v69 = vmul.f32 %v64, %v66
  %v70 = vadd.f32 %v68, %v69
  %v71 = vadd.f32 %v67, %v70
  %72 = vst [vmem:[#allocation2] sm:$0xff] %v71
  %v73 = vld [vmem:[#allocation3] sm:$0xff]
  %v74 = vmul.f32 %v63, %v63
  %v75 = vmul.f32 %v64, %v64
  %v76 = vmul.f32 %v65, %v65
  %v77 = vmul.f32 %v66, %v66
  %v78 = vadd.f32 %v74, %v76
  %v79 = vadd.f32 %v75, %v77
  %v80 = vadd.f32 %v78, %v79
  %v81 = vadd.f32 %v73, %v80
  %82 = vst [vmem:[#allocation3] sm:$0xff] %v81
  // Predicated region
  $region14: #{sorensen_dice_loss.1} parent=0 // pred_check
    %p83 = pneg %p57
  $region15: #{sorensen_dice_loss.1} parent=0 // pred_check_branch
    %85 = sbr.rel (%p83) target = $region17
  $region16: #{sorensen_dice_loss.1} parent=0 // pred_region
    %v86 = vld [vmem:[#allocation2] sm:$0xff]
    %87 = vadd.xlane.f32.xlu0 %v86
    %v88 = vpop.xlane.xlu0 %87
    %vm89 = vcmask 7168
    %90 = vst.msk [vmem:[%s2] sm:$0xff] %vm89, %v88
    %v91 = vld [vmem:[#allocation3] sm:$0xff]
    %92 = vadd.xlane.f32.xlu0 %v91
    %v93 = vpop.xlane.xlu0 %92
    %94 = vst.msk [vmem:[%s3] sm:$0xff] %vm89, %v93
  $region17: #{sorensen_dice_loss.1} parent=0 // pred_fallthru
    _
  // Predicated region
  $region18: #{sorensen_dice_loss.1} parent=0 // pred_check
    _
  $region19: #{sorensen_dice_loss.1} parent=0 // pred_check_branch
    %96 = sbr.rel (0) target = $region21
  $region20: #{sorensen_dice_loss.1} parent=0 // pred_region
    _
  $region21: #{sorensen_dice_loss.1} parent=0 // pred_fallthru
    _
  // Predicated region
  $region22: #{sorensen_dice_loss.1} parent=0 // pred_check
    _
  $region23: #{sorensen_dice_loss.1} parent=0 // pred_check_branch
    %98 = sbr.rel (0) target = $region25
  $region24: #{sorensen_dice_loss.1} parent=0 // pred_region
    _
  $region25: #{sorensen_dice_loss.1} parent=0 // pred_fallthru
    _
  // Predicated region
  $region26: #{sorensen_dice_loss.1} parent=0 // pred_check
    _
  $region27: #{sorensen_dice_loss.1} parent=0 // pred_check_branch
    %100 = sbr.rel (0) target = $region29
  $region28: #{sorensen_dice_loss.1} parent=0 // pred_region
    _
  $region29: #{sorensen_dice_loss.1} parent=0 // pred_fallthru
    _
  // Predicated region
  $region30: #{sorensen_dice_loss.1} parent=0 // pred_check
    _
  $region31: #{sorensen_dice_loss.1} parent=0 // pred_check_branch
    %102 = sbr.rel (0) target = $region33
  $region32: #{sorensen_dice_loss.1} parent=0 // pred_region
    _
  $region33: #{sorensen_dice_loss.1} parent=0 // pred_fallthru
    _

</llo_original>
